<compile_context>
chip_gen: v7x
topology: tpu7x:2x2x1
jax: 0.10.0
libtpu: 0.0.40
codegen_flags: <defaults>
</compile_context>

<pallas_src>
import functools

import jax
import jax.numpy as jnp
from jax.experimental import pallas as pl
from jax.experimental.pallas import tpu as pltpu

_UNROLL_MAX = 32  # fully unroll the in-kernel time loop up to this length


def _vmem_specs(n):
    return [pl.BlockSpec(memory_space=pltpu.MemorySpace.VMEM)] * n


# ---------------------------------------------------------------------------
# Kernel 1: one-shot matmul + bias, all operands resident in VMEM.
# Used for the hoisted input-gate projection (M = S*B rows -> one MXU-friendly
# matmul instead of S tiny serialized ones) and the tiny context projection.
# TODO(synk): for large S*B / H this should be tiled with a BlockSpec grid and
# an explicit vmem_limit_bytes; at these shapes whole-array residency is fine.
# ---------------------------------------------------------------------------
def matmul_bias_kernel(x_ref, w_ref, b_ref, o_ref):
    o_ref[...] = (jnp.dot(x_ref[...], w_ref[...],
                          preferred_element_type=jnp.float32) + b_ref[...])


def run_matmul_bias(x2d, w_t, b_row):
    M = x2d.shape[0]
    N = w_t.shape[1]
    return pl.pallas_call(
        matmul_bias_kernel,
        out_shape=jax.ShapeDtypeStruct((M, N), jnp.float32),
        in_specs=_vmem_specs(3),
        out_specs=pl.BlockSpec(memory_space=pltpu.MemorySpace.VMEM),
    )(x2d, w_t, b_row)


# ---------------------------------------------------------------------------
# Kernel 2/3: GRU recurrence over the whole sequence inside ONE kernel
# invocation (no per-timestep grid -> no ~600-cycle per-step pipeline tax).
# Per-gate weights avoid mid-vreg slicing; HBM writeback happens once.
# ---------------------------------------------------------------------------
def _make_step(gi_r_ref, gi_z_ref, gi_n_ref, whh_r, whh_z, whh_n, bhh_n):
    def step(t, h):
        gh_r = jnp.dot(h, whh_r, preferred_element_type=jnp.float32)
        gh_z = jnp.dot(h, whh_z, preferred_element_type=jnp.float32)
        gh_n = jnp.dot(h, whh_n, preferred_element_type=jnp.float32) + bhh_n
        r = jax.nn.sigmoid(gi_r_ref[t] + gh_r)   # gi_* already carry b_ih (+b_hr/b_hz)
        z = jax.nn.sigmoid(gi_z_ref[t] + gh_z)
        n = jnp.tanh(gi_n_ref[t] + r * gh_n)     # b_hn stays inside the tanh term
        return (1.0 - z) * n + z * h
    return step


def gru_layer_kernel(gi_r_ref, gi_z_ref, gi_n_ref,
                     whh_r_ref, whh_z_ref, whh_n_ref, bhh_n_ref, h0_ref,
                     hseq_ref, hlast_ref, *, seq_len):
    whh_r = whh_r_ref[...]
    whh_z = whh_z_ref[...]
    whh_n = whh_n_ref[...]
    bhh_n = bhh_n_ref[...]
    step = _make_step(gi_r_ref, gi_z_ref, gi_n_ref, whh_r, whh_z, whh_n, bhh_n)

    if seq_len <= _UNROLL_MAX:          # static full unroll: LLO sees all steps
        h = h0_ref[...]
        for t in range(seq_len):
            h = step(t, h)
            hseq_ref[t] = h
        hlast_ref[...] = h
    else:
        def body(t, h):
            h_new = step(t, h)
            hseq_ref[t] = h_new
            return h_new
        hlast_ref[...] = jax.lax.fori_loop(0, seq_len, body, h0_ref[...])


def gru_last_layer_kernel(gi_r_ref, gi_z_ref, gi_n_ref,
                          whh_r_ref, whh_z_ref, whh_n_ref, bhh_n_ref,
                          wd_ref, bd_ref, h0_ref,
                          out_ref, hlast_ref, *, seq_len):
    # Final Linear fused into the recurrence epilogue: the last layer's hidden
    # sequence never touches HBM; only (S,B,dec_out) is written out.
    whh_r = whh_r_ref[...]
    whh_z = whh_z_ref[...]
    whh_n = whh_n_ref[...]
    bhh_n = bhh_n_ref[...]
    wd = wd_ref[...]
    bd = bd_ref[...]
    step = _make_step(gi_r_ref, gi_z_ref, gi_n_ref, whh_r, whh_z, whh_n, bhh_n)

    if seq_len <= _UNROLL_MAX:
        h = h0_ref[...]
        for t in range(seq_len):
            h = step(t, h)
            out_ref[t] = jnp.dot(h, wd, preferred_element_type=jnp.float32) + bd
        hlast_ref[...] = h
    else:
        def body(t, h):
            h_new = step(t, h)
            out_ref[t] = jnp.dot(h_new, wd,
                                 preferred_element_type=jnp.float32) + bd
            return h_new
        hlast_ref[...] = jax.lax.fori_loop(0, seq_len, body, h0_ref[...])


def run_gru_layer(gi_r, gi_z, gi_n, whh_r_t, whh_z_t, whh_n_t, bhh_n, h0):
    S, B, H = gi_r.shape
    kernel = functools.partial(gru_layer_kernel, seq_len=S)
    return pl.pallas_call(
        kernel,
        out_shape=(jax.ShapeDtypeStruct((S, B, H), jnp.float32),
                   jax.ShapeDtypeStruct((B, H), jnp.float32)),
        in_specs=_vmem_specs(8),
        out_specs=(pl.BlockSpec(memory_space=pltpu.MemorySpace.VMEM),
                   pl.BlockSpec(memory_space=pltpu.MemorySpace.VMEM)),
    )(gi_r, gi_z, gi_n, whh_r_t, whh_z_t, whh_n_t, bhh_n, h0)


def run_gru_last_layer(gi_r, gi_z, gi_n, whh_r_t, whh_z_t, whh_n_t, bhh_n,
                       wd_t, bd, h0, dec_out):
    S, B, H = gi_r.shape
    kernel = functools.partial(gru_last_layer_kernel, seq_len=S)
    return pl.pallas_call(
        kernel,
        out_shape=(jax.ShapeDtypeStruct((S, B, dec_out), jnp.float32),
                   jax.ShapeDtypeStruct((B, H), jnp.float32)),
        in_specs=_vmem_specs(10),
        out_specs=(pl.BlockSpec(memory_space=pltpu.MemorySpace.VMEM),
                   pl.BlockSpec(memory_space=pltpu.MemorySpace.VMEM)),
    )(gi_r, gi_z, gi_n, whh_r_t, whh_z_t, whh_n_t, bhh_n, wd_t, bd, h0)


# ---------------------------------------------------------------------------
# Decoder (cell == 'GRU')
# ---------------------------------------------------------------------------
class PallasDecoderGRU:
    def __init__(self, dec_in, num_hidden, num_layer, dec_out, key):
        self.dec_in = dec_in
        self.H = num_hidden
        self.L = num_layer
        self.dec_out = dec_out
        H = num_hidden
        k = 1.0 / jnp.sqrt(jnp.float32(num_hidden))
        keys = jax.random.split(key, 4 * num_layer + 2)

        # raw PyTorch-layout params (also used by the pure-JAX reference)
        self.raw_layers = []
        for l in range(num_layer):
            in_l = (dec_in + num_hidden) if l == 0 else num_hidden
            w_ih = jax.random.uniform(keys[4 * l + 0], (3 * H, in_l),
                                      jnp.float32, -k, k)
            w_hh = jax.random.uniform(keys[4 * l + 1], (3 * H, H),
                                      jnp.float32, -k, k)
            b_ih = jax.random.uniform(keys[4 * l + 2], (3 * H,),
                                      jnp.float32, -k, k)
            b_hh = jax.random.uniform(keys[4 * l + 3], (3 * H,),
                                      jnp.float32, -k, k)
            self.raw_layers.append((w_ih, w_hh, b_ih, b_hh))
        w_d = jax.random.uniform(keys[-2], (dec_out, H), jnp.float32, -k, k)
        b_d = jax.random.uniform(keys[-1], (dec_out,), jnp.float32, -k, k)
        self.raw_dense = (w_d, b_d)

        # --- pre-split / pre-transposed kernel-side parameters -------------
        self.k_layers = []
        for l, (w_ih, w_hh, b_ih, b_hh) in enumerate(self.raw_layers):
            # b_hr / b_hz fold into the hoisted input-gate bias; b_hn must stay
            # inside the tanh term: n = tanh(gi_n + r*(W_hn h + b_hn)).
            gi_bias = (b_ih + jnp.concatenate(
                [b_hh[:H], b_hh[H:2 * H], jnp.zeros((H,), jnp.float32)])
            ).reshape(1, 3 * H)
            entry = dict(
                gi_bias=gi_bias,
                whh_r_t=w_hh[0:H].T,
                whh_z_t=w_hh[H:2 * H].T,
                whh_n_t=w_hh[2 * H:3 * H].T,
                bhh_n=b_hh[2 * H:3 * H].reshape(1, H),
            )
            if l == 0:
                entry['w_x_t'] = w_ih[:, :dec_in].T     # (dec_in, 3H)
                entry['w_c_t'] = w_ih[:, dec_in:].T     # (H, 3H) context part
            else:
                entry['w_ih_t'] = w_ih.T                # (H, 3H)
            self.k_layers.append(entry)

        self.wd_t = w_d.T                    # (H, dec_out)
        self.bd = b_d.reshape(1, dec_out)
        self.zero_bias = jnp.zeros((1, 3 * H), jnp.float32)
        self.enc_hidden_state = None

    def init_state(self, state):
        # GRU: state is (num_layer, B, H); keep last layer's hidden as context.
        self.enc_hidden_state = state[-1]

    def forward(self, x, state):
        # x: (B, S, dec_in), state: (num_layer, B, H)
        B, S, _ = x.shape
        H, L = self.H, self.L
        Bp = max(8, -(-B // 8) * 8)              # pad batch to f32 sublane (8)
        pad = Bp - B

        x_p = jnp.pad(x, ((0, pad), (0, 0), (0, 0)))
        st_p = jnp.pad(state, ((0, 0), (0, pad), (0, 0)))
        ctx_p = jnp.pad(self.enc_hidden_state, ((0, pad), (0, 0)))

        x_tm = jnp.transpose(x_p, (1, 0, 2))     # (S, Bp, dec_in) time-major

        h_seq = None
        out = None
        new_states = []
        for l in range(L):
            p = self.k_layers[l]
            if l == 0:
                # time-invariant encoder-context contribution, computed once
                ctx_gi = run_matmul_bias(ctx_p, p['w_c_t'], p['gi_bias'])
                gi = run_matmul_bias(x_tm.reshape(S * Bp, self.dec_in),
                                     p['w_x_t'], self.zero_bias)
                gi = gi.reshape(S, Bp, 3 * H) + ctx_gi[None]
            else:
                gi = run_matmul_bias(h_seq.reshape(S * Bp, H),
                                     p['w_ih_t'], p['gi_bias'])
                gi = gi.reshape(S, Bp, 3 * H)
            # split per gate once (outside the serial loop) -> no mid-vreg
            # slicing inside the recurrence kernel.
            gi_r = gi[..., 0:H]
            gi_z = gi[..., H:2 * H]
            gi_n = gi[..., 2 * H:3 * H]

            if l < L - 1:
                h_seq, h_last = run_gru_layer(
                    gi_r, gi_z, gi_n,
                    p['whh_r_t'], p['whh_z_t'], p['whh_n_t'], p['bhh_n'],
                    st_p[l])
            else:
                out, h_last = run_gru_last_layer(
                    gi_r, gi_z, gi_n,
                    p['whh_r_t'], p['whh_z_t'], p['whh_n_t'], p['bhh_n'],
                    self.wd_t, self.bd, st_p[l], self.dec_out)
            new_states.append(h_last)

        h_n = jnp.stack(new_states, axis=0)[:, :B]       # (L, B, H)
        out = jnp.transpose(out, (1, 0, 2))[:B]          # (B, S, dec_out)
        return out, h_n


# ---------------------------------------------------------------------------
# Pure-JAX reference (PyTorch GRU semantics) for a correctness check.
# ---------------------------------------------------------------------------
def forward_ref(dec, x, state):
    H = dec.H
    x_tm = jnp.transpose(x, (1, 0, 2))
    S, B, _ = x_tm.shape
    ctx = jnp.broadcast_to(dec.enc_hidden_state[None], (S, B, H))
    layer_in = jnp.concatenate([x_tm, ctx], axis=2)
    new_states = []
    for l in range(dec.L):
        w_ih, w_hh, b_ih, b_hh = dec.raw_layers[l]

        def step(h, xt, w_ih=w_ih, w_hh=w_hh, b_ih=b_ih, b_hh=b_hh):
            gi = xt @ w_ih.T + b_ih
            gh = h @ w_hh.T + b_hh
            r = jax.nn.sigmoid(gi[:, :H] + gh[:, :H])
            z = jax.nn.sigmoid(gi[:, H:2 * H] + gh[:, H:2 * H])
            n = jnp.tanh(gi[:, 2 * H:] + r * gh[:, 2 * H:])
            h_new = (1.0 - z) * n + z * h
            return h_new, h_new

        _, layer_in = jax.lax.scan(step, state[l], layer_in)
        new_states.append(layer_in[-1])
    w_d, b_d = dec.raw_dense
    out = layer_in @ w_d.T + b_d
    return jnp.transpose(out, (1, 0, 2)), jnp.stack(new_states, axis=0)


if __name__ == "__main__":
    # TODO(synk): LSTM branch of the original module is not implemented (GRU only).
    B, S = 2, 8
    dec_in, num_hidden, num_layer, dec_out = 8, 32, 2, 8

    key = jax.random.PRNGKey(0)
    k_param, k_x, k_state = jax.random.split(key, 3)

    dec = PallasDecoderGRU(dec_in, num_hidden, num_layer, dec_out, k_param)

    x = jax.random.normal(k_x, (B, S, dec_in), jnp.float32)
    state = jax.random.normal(k_state, (num_layer, B, num_hidden), jnp.float32)

    dec.init_state(state)                   # encoder final hidden == state here
    out, new_state = dec.forward(x, state)
    out = jax.block_until_ready(out)
    new_state = jax.block_until_ready(new_state)

    ref_out, ref_state = forward_ref(dec, x, state)
    assert out.shape == (B, S, dec_out)
    assert new_state.shape == (num_layer, B, num_hidden)
    assert jnp.allclose(out, ref_out, rtol=1e-5, atol=1e-5)
    assert jnp.allclose(new_state, ref_state, rtol=1e-5, atol=1e-5)

    print("KERNEL_OK")
</pallas_src>

<mosaic_0001>
module attributes {stable_mosaic.version = 11 : i64} {
  func.func @matmul_bias_kernel(%arg0: memref<8x32xf32, #tpu.memory_space<vmem>>, %arg1: memref<32x96xf32, #tpu.memory_space<vmem>>, %arg2: memref<1x96xf32, #tpu.memory_space<vmem>>, %arg3: memref<8x96xf32, #tpu.memory_space<vmem>>) attributes {dimension_semantics = [], scalar_prefetch = 0 : i64, scratch_operands = 0 : i64, tpu.core_type = #tpu.core_type<tc>} {
    %c0 = arith.constant 0 : index
    %c0_0 = arith.constant 0 : index
    %0 = vector.load %arg0[%c0, %c0_0] : memref<8x32xf32, #tpu.memory_space<vmem>>, vector<8x32xf32>
    %c0_1 = arith.constant 0 : index
    %c0_2 = arith.constant 0 : index
    %1 = vector.load %arg1[%c0_1, %c0_2] : memref<32x96xf32, #tpu.memory_space<vmem>>, vector<32x96xf32>
    %cst = arith.constant dense<0.000000e+00> : vector<8x96xf32>
    %2 = tpu.matmul %0, %1, %cst {dimension_numbers = #tpu.dot_dimension_numbers<[1], [0], [0], [1], [0, 0, 1, 1], [], []>} : vector<8x32xf32>, vector<32x96xf32>, vector<8x96xf32> -> vector<8x96xf32>
    %c0_3 = arith.constant 0 : index
    %c0_4 = arith.constant 0 : index
    %3 = vector.load %arg2[%c0_3, %c0_4] : memref<1x96xf32, #tpu.memory_space<vmem>>, vector<1x96xf32>
    %4 = vector.broadcast %3 : vector<1x96xf32> to vector<8x96xf32>
    %5 = arith.addf %2, %4 : vector<8x96xf32>
    %c0_5 = arith.constant 0 : index
    %c0_6 = arith.constant 0 : index
    %6 = vector.load %arg3[%c0_5, %c0_6] : memref<8x96xf32, #tpu.memory_space<vmem>>, vector<8x96xf32>
    tpu.vector_store %arg3[%c0_5, %c0_6], %5 {strides = array<i32>} : memref<8x96xf32, #tpu.memory_space<vmem>>, vector<8x96xf32>,
    return
  }
}

</mosaic_0001>

<llo_original>
// kernel: tpu_custom_call.1
$region0: #{tpu_custom_call.1}
  #allocation0 [shape = 'u32[]', space=smem, size = 0x4, offset = 0x4, fixed_abs, tag = 'smem constant byte address 0x4 - core index']
  #allocation1 [shape = 'u32[144,128]{1,0:T(1,128)}', space=vmem, size = 0x12000, scoped, tag = 'internal scratch']
  %s0 = inlined_call_operand.hbm [shape: f32[8,32], index: 0, kind: input, shape index: {}]
  %s1 = inlined_call_operand.hbm [shape: f32[32,96], index: 1, kind: input, shape index: {}]
  %s2 = inlined_call_operand.vmem [shape: f32[1,96], index: 2, kind: input, shape index: {}]
  %s3 = inlined_call_operand.hbm [shape: f32[8,96], index: 3, kind: output, shape index: {}]
  %s4 = sld [smem:[#allocation0]]
  $region30: #{tpu_custom_call.1} parent=0
    _
  %s6 = ssub.s32 1, %s4
  %s7 = scalar_select 0, %s6, %s4
  $region1: #{tpu_custom_call.1} parent=0
    #allocation2 [shape = 'u8[4096]{0}', space=vmem, size = 0x1000, scoped, tag = 'input window, operand 0, single buffered']
    #allocation3 [shape = 's32[1]{0}', space=sflag, size = 0x4, scoped, tag = 'scoped memory for tpu_custom_call.1']
    #allocation4 [shape = 's32[1]{0}', space=sflag, size = 0x4, scoped, tag = 'scoped memory for tpu_custom_call.1']
    #allocation5 [shape = 'u8[16384]{0}', space=vmem, size = 0x4000, scoped, tag = 'input window, operand 1, single buffered']
    #allocation6 [shape = 's32[1]{0}', space=sflag, size = 0x4, scoped, tag = 'scoped memory for tpu_custom_call.1']
    #allocation7 [shape = 'u8[4096]{0}', space=vmem, size = 0x1000, scoped, tag = 'output window, operand 0, single buffered']
    %8 = vsyncpa [#allocation3], 0
    %9 = vsyncpa [#allocation6], 0
    %10 = vsyncpa [#allocation4], 0
    // Predicated region
    $region2: #{tpu_custom_call.1} parent=1 // pred_check
      _
    $region3: #{tpu_custom_call.1} parent=1 // pred_check_branch
      %12 = sbr.rel (0) target = $region5
    $region4: #{tpu_custom_call.1} parent=1 // pred_region
      %s14 = ssub.s32 128, 128
      %15 = vsyncadd [#allocation3], %s14
      %s17 = sshll.u32 [#allocation2], 4
      %s18 = int_to_ptr.vmem [resolvable:$true] %s17
      %20 = dma.hbm_to_vmem [thread:$0]  %s0, 128, %s18, [#allocation3]
    $region5: #{tpu_custom_call.1} parent=1 // pred_fallthru
      _
    // Predicated region
    $region6: #{tpu_custom_call.1} parent=1 // pred_check
      _
    $region7: #{tpu_custom_call.1} parent=1 // pred_check_branch
      %22 = sbr.rel (0) target = $region9
    $region8: #{tpu_custom_call.1} parent=1 // pred_region
      %s24 = ssub.s32 512, 512
      %25 = vsyncadd [#allocation6], %s24
      %s26 = sshll.u32 [#allocation5], 4
      %s27 = int_to_ptr.vmem [resolvable:$true] %s26
      %32 = dma.hbm_to_vmem [thread:$0]  %s1, 512, %s27, [#allocation6], 128, 128, 8
    $region9: #{tpu_custom_call.1} parent=1 // pred_fallthru
      _
    // Predicated region
    $region10: #{tpu_custom_call.1} parent=1 // pred_check
      _
    $region11: #{tpu_custom_call.1} parent=1 // pred_check_branch
      %34 = sbr.rel (0) target = $region13
    $region12: #{tpu_custom_call.1} parent=1 // pred_region
      _
    $region13: #{tpu_custom_call.1} parent=1 // pred_fallthru
      _
    // Predicated region
    $region14: #{tpu_custom_call.1} parent=1 // pred_check
      _
    $region15: #{tpu_custom_call.1} parent=1 // pred_check_branch
      %36 = sbr.rel (0) target = $region17
    $region16: #{tpu_custom_call.1} parent=1 // pred_region
      %37 = dma.done [#allocation3], 128
    $region17: #{tpu_custom_call.1} parent=1 // pred_fallthru
      _
    // Predicated region
    $region18: #{tpu_custom_call.1} parent=1 // pred_check
      _
    $region19: #{tpu_custom_call.1} parent=1 // pred_check_branch
      %39 = sbr.rel (0) target = $region21
    $region20: #{tpu_custom_call.1} parent=1 // pred_region
      %40 = dma.done [#allocation6], 512
    $region21: #{tpu_custom_call.1} parent=1 // pred_fallthru
      _
    %v41 = vld [vmem:[#allocation2] sm:$0xff]
    %v42 = vld [vmem:[#allocation5] sm:$0xff]
    %v43 = vld [vmem:[#allocation5 + $0x8] sm:$0xff]
    %v44 = vld [vmem:[#allocation5 + $0x10] sm:$0xff]
    %v45 = vld [vmem:[#allocation5 + $0x18] sm:$0xff]
    %v46 = vld [vmem:[%s2] sm:$0x1]
    %v48 = vlaneseq
    %v49 = vshrl.u32 %v48, 7
    %v50 = vsub.s32 0, %v49
    %v51 = vrot.slane %v46, %v50
    %vm53 = vcmask 261120
    %v55 = vsel %vm53, %v41, 0
    %57 = vmatprep.subr.mxu0 0.0
    %58 = vmatpush1.msra.mxu0 %v42
    %59 = vmatprep.subr.mxu0 0.0
    %60 = vmatpush1.msra.mxu0 %v43
    %61 = vmatprep.subr.mxu0 0.0
    %62 = vmatpush1.msra.mxu0 %v44
    %63 = vmatprep.subr.mxu0 0.0
    %64 = vmatpush1.msra.mxu0 %v45
    %65 = vmatprep.subr.mxu0 0.0
    %66 = vmatpush1.msra.mxu0 0.0
    %67 = vmatprep.subr.mxu0 0.0
    %68 = vmatpush1.msra.mxu0 0.0
    %69 = vmatprep.subr.mxu0 0.0
    %70 = vmatpush1.msra.mxu0 0.0
    %71 = vmatprep.subr.mxu0 0.0
    %72 = vmatpush1.msra.mxu0 0.0
    %73 = vmatprep.subr.mxu0 0.0
    %74 = vmatpush1.msra.mxu0 0.0
    %75 = vmatprep.subr.mxu0 0.0
    %76 = vmatpush1.msra.mxu0 0.0
    %77 = vmatprep.subr.mxu0 0.0
    %78 = vmatpush1.msra.mxu0 0.0
    %79 = vmatprep.subr.mxu0 0.0
    %80 = vmatpush1.msra.mxu0 0.0
    %81 = vmatprep.subr.mxu0 0.0
    %82 = vmatpush1.msra.mxu0 0.0
    %83 = vmatprep.subr.mxu0 0.0
    %84 = vmatpush1.msra.mxu0 0.0
    %85 = vmatprep.subr.mxu0 0.0
    %86 = vmatpush1.msra.mxu0 0.0
    %87 = vmatprep.subr.mxu0 0.0
    %88 = vmatpush1.msra.mxu0 0.0
    %89 = vmatprep.subr.mxu0 0.0
    %90 = vmatpush1.msra.mxu0 0.0
    %91 = vmatprep.subr.mxu0 0.0
    %92 = vmatpush1.msra.mxu0 0.0
    %93 = vmatprep.subr.mxu0 0.0
    %94 = vmatpush1.msra.mxu0 0.0
    %95 = vmatprep.subr.mxu0 0.0
    %96 = vmatpush1.msra.mxu0 0.0
    %97 = vmatprep.subr.mxu0 0.0
    %98 = vmatpush1.msra.mxu0 0.0
    %99 = vmatprep.subr.mxu0 0.0
    %100 = vmatpush1.msra.mxu0 0.0
    %101 = vmatprep.subr.mxu0 0.0
    %102 = vmatpush1.msra.mxu0 0.0
    %103 = vmatprep.subr.mxu0 0.0
    %104 = vmatpush1.msra.mxu0 0.0
    %105 = vmatprep.subr.mxu0 0.0
    %106 = vmatpush1.msra.mxu0 0.0
    %107 = vmatprep.subr.mxu0 0.0
    %108 = vmatpush1.msra.mxu0 0.0
    %109 = vmatprep.subr.mxu0 0.0
    %110 = vmatpush1.msra.mxu0 0.0
    %111 = vmatprep.subr.mxu0 0.0
    %112 = vmatpush1.msra.mxu0 0.0
    %113 = vmatprep.subr.mxu0 0.0
    %114 = vmatpush1.msra.mxu0 0.0
    %115 = vmatprep.subr.mxu0 0.0
    %116 = vmatpush1.msra.mxu0 0.0
    %117 = vmatprep.subr.mxu0 0.0
    %118 = vmatpush1.msra.mxu0 0.0
    %119 = vmatprep.subr.mxu0 0.0
    %120 = vmatpush1.msra.mxu0 0.0
    %121 = vmatprep.mubr.f32.mxu0 0.0
    %122 = vmatmul.mubr.f32.gmra.mrb[0].mxu0 %v55
    %v123 = vpop.f32.mrb[0].mxu0
    %v124 = vadd.f32 %v51, %v123
    %v125 = vpop.f32.mrb[0].mxu0
    %126 = vdwg.mxu0
    %vm127 = vcmask 785408
    %128 = vst.msk [vmem:[#allocation7] sm:$0xff] %vm127, %v124
    // Predicated region
    $region22: #{tpu_custom_call.1} parent=1 // pred_check
      _
    $region23: #{tpu_custom_call.1} parent=1 // pred_check_branch
      %130 = sbr.rel (0) target = $region25
    $region24: #{tpu_custom_call.1} parent=1 // pred_region
      %s132 = ssub.s32 128, 128
      %133 = vsyncadd [#allocation4], %s132
      %s135 = sshll.u32 [#allocation7], 4
      %s136 = int_to_ptr.vmem [resolvable:$true] %s135
      %138 = dma.vmem_to_hbm [thread:$0]  %s136, 128, %s3, [#allocation4]
    $region25: #{tpu_custom_call.1} parent=1 // pred_fallthru
      _
    // Predicated region
    $region26: #{tpu_custom_call.1} parent=1 // pred_check
      _
    $region27: #{tpu_custom_call.1} parent=1 // pred_check_branch
      %140 = sbr.rel (0) target = $region29
    $region28: #{tpu_custom_call.1} parent=1 // pred_region
      %141 = dma.done [#allocation4], 128
    $region29: #{tpu_custom_call.1} parent=1 // pred_fallthru
      _
    %142 = vsyncpa [#allocation3], 1
    %143 = vsyncpa [#allocation6], 1
    %144 = vsyncpa [#allocation4], 1

</llo_original>
